<compile_context>
chip_gen: v6e
topology: v6e:2x2x1
jax: 0.10.0
libtpu: 0.0.40
codegen_flags: <defaults>
</compile_context>

<pallas_src>
import functools

import jax
import jax.numpy as jnp
from jax.experimental import pallas as pl
from jax.experimental.pallas import tpu as pltpu

TEMP_MIN = 1e-4


# ----------------------------------------------------------------------------
# Kernel
# ----------------------------------------------------------------------------
def _diff_nn_kernel(temp_ref, f0_ref, f1_ref, hy2_ref, asgn_ref, idx_ref, *,
                    temp_min, training):
    # f0_ref: (TB, TN, D), f1_ref: (TB, M, D), hy2_ref: (TB, 1, M) f32
    x = f0_ref[...]
    y = f1_ref[...]
    half_y2 = hy2_ref[...]                                     # 0.5 * ||y||^2

    # temperature: 1 / clamp(temp ** 2, min=temp_min)   (scalar, from SMEM)
    t = temp_ref[0]
    inv_t = 1.0 / jnp.maximum(t * t, jnp.float32(temp_min))
    two_inv_t = 2.0 * inv_t

    # Batched contraction over D, operands in native dtype, f32 accumulation.
    raw = jax.lax.dot_general(
        x, y,
        dimension_numbers=(((2,), (2,)), ((0,), (0,))),
        preferred_element_type=jnp.float32)                    # (TB, TN, M)

    # logits = -dist^2 / temp up to a per-row constant (||x||^2 dropped:
    # softmax/argmax along M are invariant to it).  Scale applied in f32 after
    # the matmul; the extra (TB,TN,M) VPU work hides under the HBM-bound store.
    logits = (raw - half_y2) * two_inv_t                       # (TB, TN, M)

    lmax = jnp.max(logits, axis=-1, keepdims=True)             # (TB, TN, 1)

    # First-occurrence argmax along M, reusing lmax (argmax(logits) ==
    # argmax(softmax(logits)), identical first-occurrence semantics).
    col = jax.lax.broadcasted_iota(jnp.int32, logits.shape, dimension=2)
    big = jnp.iinfo(jnp.int32).max
    idx_col = jnp.min(jnp.where(logits == lmax, col, big),
                      axis=-1, keepdims=True)                  # (TB, TN, 1)

    if training:
        # softmax(logits): exp + row-sum + approx reciprocal (EUP slot).
        e = jnp.exp(logits - lmax)
        denom = jnp.sum(e, axis=-1, keepdims=True)             # (TB, TN, 1)
        asgn = e * pl.reciprocal(denom, approx=True)           # (TB, TN, M)
    else:
        # eval: asgn - probs.detach() + probs == one-hot(argmax) numerically;
        # skip the softmax (exp / sum / reciprocal) entirely.
        asgn = (col == idx_col).astype(jnp.float32)

    asgn_ref[...] = asgn.astype(asgn_ref.dtype)
    # Lane-dense index output: a (TB, 1, TN) row instead of a width-1 column.
    idx_ref[...] = jnp.swapaxes(idx_col, -1, -2)


# ----------------------------------------------------------------------------
# Tile / VMEM selection
# ----------------------------------------------------------------------------
def _vmem_budget():
    """Generation-aware (budget, physical_cap) in bytes."""
    cap = 64 * 1024 * 1024                        # conservative (v7x) fallback
    try:
        info = pltpu.get_tpu_info()
        cap = int(getattr(info, "vmem_capacity_bytes", cap)) or cap
    except Exception:
        pass
    # ~3/4 of physical: leaves room for compiler-internal scratch & misc
    # (v5e/v6e 128 MiB -> ~96 MiB usable; v7x 64 MiB -> ~48 MiB usable).
    return (cap * 3) // 4, cap


def _choose_tiles(B, N, M, D, x_bytes, y_bytes, out_bytes, budget, max_tn=None):
    """Pick (TB, TN) minimizing a simple step-count/bytes cost under `budget`.

    TN must be a multiple of 128 (lane dim of the (TB,1,TN) idx block) OR
    exactly N (full-N resident block).  The N grid axis uses pl.cdiv, so TN
    need not divide N (the ragged edge block is masked by Pallas).
    """
    OVH = 256 * 1024                       # fixed per-grid-step cost, in bytes

    def step_bytes(tb, tn):
        # Double-buffered by the BlockSpec pipeline.
        ins = tb * (tn * D * x_bytes + M * D * y_bytes + M * 4)
        outs = tb * (tn * M * out_bytes + tn * 4)
        return 2 * (ins + outs)

    cands = []
    if max_tn is None or N <= max_tn:
        cands.append(N)                    # full-N block (always layout-legal)
    for c in (512, 384, 256, 128):
        if c < N and (max_tn is None or c <= max_tn):
            cands.append(c)
    if not cands:
        cands = [N]

    tbs = [t for t in range(min(B, 16), 0, -1) if B % t == 0]

    best = None
    for tn in cands:
        for tb in tbs:
            sb = step_bytes(tb, tn)
            if sb > budget:
                continue
            steps = (B // tb) * pl.cdiv(N, tn)
            cost = steps * (OVH + sb // 2)
            key = (cost, sb)
            if best is None or key < best[0]:
                best = (key, tb, tn, sb)

    if best is None:
        # Even the smallest legal tile overflows the budget (huge M).
        # TODO(synk): M-tiled online-softmax path; until then take the
        # smallest tile and stretch vmem_limit_bytes.
        tn = min(cands, key=lambda c: step_bytes(1, c))
        return 1, tn, step_bytes(1, tn)

    _, tb, tn, sb = best
    return tb, tn, sb


# ----------------------------------------------------------------------------
# Wrapper
# ----------------------------------------------------------------------------
def diff_nn_search(feats0, feats1, temp, *, temp_min=TEMP_MIN, training=True,
                   asgn_dtype=jnp.float32, max_tn=None, allow_xla_fallback=True):
    """Pallas implementation of DiffNNSearch.forward.

    feats0: (B, N, D), feats1: (B, M, D) (float32 or bfloat16)
    temp:   scalar float32 parameter (temp_init in the torch module)
    returns (asgn_diff (B, N, M) asgn_dtype, indices (B, N) int32)
    """
    B, N, D = feats0.shape
    B2, M, D2 = feats1.shape
    assert B == B2 and D == D2

    # Tiny problems: lane utilisation (M < 128) and per-step overhead make the
    # tiled pallas_call a loss -> plain XLA.
    if allow_xla_fallback and (M < 128 or N * M < 4096):
        asgn, idx = _reference(feats0, feats1, temp,
                               temp_min=temp_min, training=training)
        return asgn.astype(asgn_dtype), idx

    budget, vmem_cap = _vmem_budget()
    tb, tn, step_bytes = _choose_tiles(
        B, N, M, D,
        jnp.dtype(feats0.dtype).itemsize, jnp.dtype(feats1.dtype).itemsize,
        jnp.dtype(asgn_dtype).itemsize, budget, max_tn=max_tn)

    # Grid order (b outer, n inner): the f1 block index (b, 0, 0) is constant
    # across consecutive n steps, so the (TB, M, D) block is DMA'd once per
    # batch group instead of N/TN times.
    grid = (B // tb, pl.cdiv(N, tn))

    # 0.5 * ||y||^2 once per batch, f32, lane-dense (B, 1, M); streamed to the
    # kernel instead of recomputing a full (TB,M,D) cast + reduce every step.
    half_y2 = 0.5 * jnp.sum(jnp.square(feats1.astype(jnp.float32)),
                            axis=-1)[:, None, :]               # (B, 1, M)

    # Scoped-VMEM limit from the chosen tiles (with headroom), capped just
    # under the generation's physical VMEM.
    vmem_limit = int(min(vmem_cap - (2 << 20),
                         max(16 << 20, step_bytes + step_bytes // 2 + (2 << 20))))

    kernel = functools.partial(_diff_nn_kernel,
                               temp_min=float(temp_min),
                               training=bool(training))

    asgn, idx = pl.pallas_call(
        kernel,
        out_shape=(
            jax.ShapeDtypeStruct((B, N, M), asgn_dtype),
            jax.ShapeDtypeStruct((B, 1, N), jnp.int32),   # lane-dense indices
        ),
        grid_spec=pltpu.PrefetchScalarGridSpec(
            num_scalar_prefetch=1,                        # temp -> SMEM
            grid=grid,
            in_specs=[
                pl.BlockSpec((tb, tn, D), lambda b, n, t: (b, n, 0)),
                pl.BlockSpec((tb, M, D), lambda b, n, t: (b, 0, 0)),
                pl.BlockSpec((tb, 1, M), lambda b, n, t: (b, 0, 0)),
            ],
            out_specs=[
                pl.BlockSpec((tb, tn, M), lambda b, n, t: (b, n, 0)),
                pl.BlockSpec((tb, 1, tn), lambda b, n, t: (b, 0, n)),
            ],
        ),
        compiler_params=pltpu.CompilerParams(
            dimension_semantics=("parallel", "parallel"),
            vmem_limit_bytes=vmem_limit),
    )(jnp.reshape(jnp.asarray(temp, jnp.float32), (1,)), feats0, feats1, half_y2)

    return asgn, jnp.squeeze(idx, axis=1)


# ----------------------------------------------------------------------------
# Pure-JAX reference (also the tiny-shape XLA fallback)
# ----------------------------------------------------------------------------
def _reference(feats0, feats1, temp, *, temp_min=TEMP_MIN, training=True):
    """Pure-JAX reference mirroring the PyTorch forward."""
    f0 = feats0.astype(jnp.float32)
    f1 = feats1.astype(jnp.float32)
    x2 = jnp.sum(f0 ** 2, axis=-1, keepdims=True)
    y2 = jnp.sum(f1 ** 2, axis=-1, keepdims=True)
    d2 = (-2.0 * jnp.einsum("bnd,bmd->bnm", f0, f1)
          + x2 + jnp.swapaxes(y2, -2, -1))
    t = jnp.maximum(jnp.asarray(temp, jnp.float32) ** 2, temp_min)
    probs = jax.nn.softmax(-d2 / t, axis=-1)
    idx = jnp.argmax(probs, axis=-1).astype(jnp.int32)
    if training:
        asgn = probs
    else:
        # eval: asgn - probs.detach() + probs == one-hot(argmax) numerically.
        asgn = jax.nn.one_hot(idx, probs.shape[-1], dtype=jnp.float32)
    return asgn, idx


# ----------------------------------------------------------------------------
if __name__ == "__main__":
    key = jax.random.PRNGKey(0)
    k0, k1, k2, k3 = jax.random.split(key, 4)
    temp = jnp.float32(1.0)   # temp_init = 1.0 as in nn.Parameter(tensor(1.0))

    # --- small shapes consistent with the module (force the Pallas path) ---
    B, N, M, D = 2, 8, 16, 32
    feats0 = jax.random.normal(k0, (B, N, D), dtype=jnp.float32)
    feats1 = jax.random.normal(k1, (B, M, D), dtype=jnp.float32)

    asgn, idx = diff_nn_search(feats0, feats1, temp, training=True,
                               allow_xla_fallback=False)
    jax.block_until_ready((asgn, idx))
    asgn_ref, idx_ref = _reference(feats0, feats1, temp, training=True)
    assert asgn.shape == (B, N, M) and idx.shape == (B, N)
    # approx-reciprocal softmax denominator -> ~1e-3-level tolerance
    assert jnp.allclose(asgn, asgn_ref, atol=2e-3, rtol=2e-3)
    assert jnp.array_equal(idx, idx_ref)

    # eval-mode forward (straight-through one-hot value, softmax skipped)
    asgn_e, idx_e = diff_nn_search(feats0, feats1, temp, training=False,
                                   allow_xla_fallback=False)
    jax.block_until_ready((asgn_e, idx_e))
    asgn_eref, idx_eref = _reference(feats0, feats1, temp, training=False)
    assert jnp.array_equal(asgn_e, asgn_eref)
    assert jnp.array_equal(idx_e, idx_eref)

    # default dispatch on the tiny shape takes the XLA fallback -> smoke test
    asgn_f, idx_f = diff_nn_search(feats0, feats1, temp, training=True)
    jax.block_until_ready((asgn_f, idx_f))
    assert jnp.allclose(asgn_f, asgn_ref, atol=1e-5, rtol=1e-5)
    assert jnp.array_equal(idx_f, idx_ref)

    # --- larger shape: full-N resident tile (tn == N == 640, 1 n-step) ---
    Bb, Nb, Mb, Db = 1, 640, 256, 128
    f0b = jax.random.normal(k2, (Bb, Nb, Db), dtype=jnp.float32)
    f1b = jax.random.normal(k3, (Bb, Mb, Db), dtype=jnp.float32)
    asgn_b, idx_b = diff_nn_search(f0b, f1b, temp, training=True)
    jax.block_until_ready((asgn_b, idx_b))
    asgn_bref, idx_bref = _reference(f0b, f1b, temp, training=True)
    assert asgn_b.shape == (Bb, Nb, Mb) and idx_b.shape == (Bb, Nb)
    assert jnp.allclose(asgn_b, asgn_bref, atol=2e-3, rtol=2e-3)
    # allow an extremely rare near-tie argmax flip from the different (but
    # equivalent) arithmetic path; a wrong index_map would scramble most rows.
    assert jnp.mean((idx_b == idx_bref).astype(jnp.float32)) > 0.999

    # --- same arrays, capped TN: exercises the pl.cdiv masked-edge tiling ---
    asgn_c, idx_c = diff_nn_search(f0b, f1b, temp, training=True, max_tn=512)
    jax.block_until_ready((asgn_c, idx_c))
    assert jnp.allclose(asgn_c, asgn_bref, atol=2e-3, rtol=2e-3)
    assert jnp.mean((idx_c == idx_bref).astype(jnp.float32)) > 0.999

    print("KERNEL_OK")
</pallas_src>

<mosaic_0001>
module attributes {stable_mosaic.version = 11 : i64} {
  func.func @_diff_nn_kernel(%arg0: i32, %arg1: i32, %arg2: memref<1xf32, #tpu.memory_space<smem>>, %arg3: memref<2x8x32xf32, #tpu.memory_space<vmem>>, %arg4: memref<2x16x32xf32, #tpu.memory_space<vmem>>, %arg5: memref<2x1x16xf32, #tpu.memory_space<vmem>>, %arg6: memref<2x8x16xf32, #tpu.memory_space<vmem>>, %arg7: memref<2x1x8xi32, #tpu.memory_space<vmem>>) attributes {dimension_semantics = [#tpu.dimension_semantics<parallel>, #tpu.dimension_semantics<parallel>], iteration_bounds = array<i64: 1, 1>, scalar_prefetch = 1 : i64, scratch_operands = 0 : i64, tpu.core_type = #tpu.core_type<tc>, window_params = [{transform_indices = @transform_0, window_bounds = array<i64: 2, 8, 32>}, {transform_indices = @transform_1, window_bounds = array<i64: 2, 16, 32>}, {transform_indices = @transform_2, window_bounds = array<i64: 2, 1, 16>}, {transform_indices = @transform_3, window_bounds = array<i64: 2, 8, 16>}, {transform_indices = @transform_4, window_bounds = array<i64: 2, 1, 8>}]} {
    %c0 = arith.constant 0 : index
    %c0_0 = arith.constant 0 : index
    %c0_1 = arith.constant 0 : index
    %0 = vector.load %arg3[%c0, %c0_0, %c0_1] : memref<2x8x32xf32, #tpu.memory_space<vmem>>, vector<2x8x32xf32>
    %c0_2 = arith.constant 0 : index
    %c0_3 = arith.constant 0 : index
    %c0_4 = arith.constant 0 : index
    %1 = vector.load %arg4[%c0_2, %c0_3, %c0_4] : memref<2x16x32xf32, #tpu.memory_space<vmem>>, vector<2x16x32xf32>
    %c0_5 = arith.constant 0 : index
    %c0_6 = arith.constant 0 : index
    %c0_7 = arith.constant 0 : index
    %2 = vector.load %arg5[%c0_5, %c0_6, %c0_7] : memref<2x1x16xf32, #tpu.memory_space<vmem>>, vector<2x1x16xf32>
    %c0_8 = arith.constant 0 : index
    %3 = memref.load %arg2[%c0_8] : memref<1xf32, #tpu.memory_space<smem>>
    %4 = arith.mulf %3, %3 : f32
    %cst = arith.constant 9.99999974E-5 : f32
    %5 = arith.maximumf %4, %cst : f32
    %cst_9 = arith.constant 1.000000e+00 : f32
    %6 = arith.divf %cst_9, %5 : f32
    %cst_10 = arith.constant 2.000000e+00 : f32
    %7 = arith.mulf %cst_10, %6 : f32
    %cst_11 = arith.constant dense<0.000000e+00> : vector<2x8x16xf32>
    %8 = tpu.matmul %0, %1, %cst_11 {dimension_numbers = #tpu.dot_dimension_numbers<[2], [2], [1], [1], [0, 0, 0, 1, 1, 1], [0], [0]>} : vector<2x8x32xf32>, vector<2x16x32xf32>, vector<2x8x16xf32> -> vector<2x8x16xf32>
    %9 = vector.broadcast %2 : vector<2x1x16xf32> to vector<2x8x16xf32>
    %10 = arith.subf %8, %9 : vector<2x8x16xf32>
    %11 = vector.broadcast %7 : f32 to vector<2x8x16xf32>
    %12 = arith.mulf %10, %11 : vector<2x8x16xf32>
    %cst_12 = arith.constant dense<0xFF800000> : vector<2x8xf32>
    %13 = vector.multi_reduction <maximumf>, %12, %cst_12 [2] : vector<2x8x16xf32> to vector<2x8xf32>
    %14 = vector.shape_cast %13 : vector<2x8xf32> to vector<2x8x1xf32>
    %15 = tpu.iota {dimensions = array<i32: 2>} : vector<2x8x16xi32>
    %16 = vector.broadcast %14 : vector<2x8x1xf32> to vector<2x8x16xf32>
    %17 = arith.cmpf oeq, %12, %16 : vector<2x8x16xf32>
    %c2147483647_i32 = arith.constant 2147483647 : i32
    %18 = vector.broadcast %c2147483647_i32 : i32 to vector<2x8x16xi32>
    %19 = arith.select %17, %15, %18 : vector<2x8x16xi1>, vector<2x8x16xi32>
    %cst_13 = arith.constant dense<2147483647> : vector<2x8xi32>
    %20 = vector.multi_reduction <minsi>, %19, %cst_13 [2] : vector<2x8x16xi32> to vector<2x8xi32>
    %21 = vector.shape_cast %20 : vector<2x8xi32> to vector<2x8x1xi32>
    %22 = vector.broadcast %14 : vector<2x8x1xf32> to vector<2x8x16xf32>
    %23 = arith.subf %12, %22 : vector<2x8x16xf32>
    %24 = math.exp %23 : vector<2x8x16xf32>
    %cst_14 = arith.constant dense<0.000000e+00> : vector<2x8xf32>
    %25 = vector.multi_reduction <add>, %24, %cst_14 [2] : vector<2x8x16xf32> to vector<2x8xf32>
    %26 = vector.shape_cast %25 : vector<2x8xf32> to vector<2x8x1xf32>
    %27 = tpu.reciprocal %26 {approx = true} : vector<2x8x1xf32> -> vector<2x8x1xf32>
    %28 = vector.broadcast %27 : vector<2x8x1xf32> to vector<2x8x16xf32>
    %29 = arith.mulf %24, %28 : vector<2x8x16xf32>
    %c0_15 = arith.constant 0 : index
    %c0_16 = arith.constant 0 : index
    %c0_17 = arith.constant 0 : index
    %30 = vector.load %arg6[%c0_15, %c0_16, %c0_17] : memref<2x8x16xf32, #tpu.memory_space<vmem>>, vector<2x8x16xf32>
    tpu.vector_store %arg6[%c0_15, %c0_16, %c0_17], %29 {strides = array<i32>} : memref<2x8x16xf32, #tpu.memory_space<vmem>>, vector<2x8x16xf32>,
    %31 = tpu.transpose %21, [0, 2, 1] : vector<2x8x1xi32> -> vector<2x1x8xi32>
    %c0_18 = arith.constant 0 : index
    %c0_19 = arith.constant 0 : index
    %c0_20 = arith.constant 0 : index
    %32 = vector.load %arg7[%c0_18, %c0_19, %c0_20] : memref<2x1x8xi32, #tpu.memory_space<vmem>>, vector<2x1x8xi32>
    tpu.vector_store %arg7[%c0_18, %c0_19, %c0_20], %31 {strides = array<i32>} : memref<2x1x8xi32, #tpu.memory_space<vmem>>, vector<2x1x8xi32>,
    return
  }
  func.func @transform_0(%arg0: i32, %arg1: i32, %arg2: memref<1xf32, #tpu.memory_space<smem>>) -> (i32, i32, i32) {
    %c0_i32 = arith.constant 0 : i32
    %c0_i32_0 = arith.constant 0 : i32
    return %arg0, %arg1, %c0_i32 : i32, i32, i32
  }
  func.func @transform_1(%arg0: i32, %arg1: i32, %arg2: memref<1xf32, #tpu.memory_space<smem>>) -> (i32, i32, i32) {
    %c0_i32 = arith.constant 0 : i32
    %c0_i32_0 = arith.constant 0 : i32
    %c0_i32_1 = arith.constant 0 : i32
    return %arg0, %c0_i32, %c0_i32_0 : i32, i32, i32
  }
  func.func @transform_2(%arg0: i32, %arg1: i32, %arg2: memref<1xf32, #tpu.memory_space<smem>>) -> (i32, i32, i32) {
    %c0_i32 = arith.constant 0 : i32
    %c0_i32_0 = arith.constant 0 : i32
    %c0_i32_1 = arith.constant 0 : i32
    return %arg0, %c0_i32, %c0_i32_0 : i32, i32, i32
  }
  func.func @transform_3(%arg0: i32, %arg1: i32, %arg2: memref<1xf32, #tpu.memory_space<smem>>) -> (i32, i32, i32) {
    %c0_i32 = arith.constant 0 : i32
    %c0_i32_0 = arith.constant 0 : i32
    return %arg0, %arg1, %c0_i32 : i32, i32, i32
  }
  func.func @transform_4(%arg0: i32, %arg1: i32, %arg2: memref<1xf32, #tpu.memory_space<smem>>) -> (i32, i32, i32) {
    %c0_i32 = arith.constant 0 : i32
    %c0_i32_0 = arith.constant 0 : i32
    return %arg0, %c0_i32, %arg1 : i32, i32, i32
  }
}

</mosaic_0001>

<llo_original>
// kernel: tpu_custom_call.1
$region0: #{tpu_custom_call.1}
  #allocation0 [shape = 'u32[]', space=smem, size = 0x4, offset = 0x4, fixed_abs, tag = 'smem constant byte address 0x4 - core index']
  #allocation1 [shape = 'u32[144,128]{1,0:T(1,128)}', space=vmem, size = 0x12000, scoped, tag = 'internal scratch']
  #allocation2 [shape = 's32[1]{0}', space=sflag, size = 0x4, scoped, tag = 'scoped memory for tpu_custom_call.1']
  #allocation3 [shape = 'f32[1]{0:T(128)S(6)}', space=smem, size = 0x200, scoped, tag = 'prefetched SMEM operand 0']
  %s0 = inlined_call_operand.<no memory space> [shape: f32[1], index: 0, kind: input, shape index: {}]
  %s1 = inlined_call_operand.hbm [shape: f32[2,8,32], index: 1, kind: input, shape index: {}]
  %s2 = inlined_call_operand.hbm [shape: f32[2,16,32], index: 2, kind: input, shape index: {}]
  %s3 = inlined_call_operand.vmem [shape: f32[2,1,16], index: 3, kind: input, shape index: {}]
  %s4 = inlined_call_operand.hbm [shape: f32[2,8,16], index: 4, kind: output, shape index: {0}]
  %s5 = inlined_call_operand.hbm [shape: s32[2,1,8], index: 5, kind: output, shape index: {1}]
  %6 = xla_tuple %s4, %s5
  %s7 = sld [smem:[#allocation0]]
  $region38: #{tpu_custom_call.1} parent=0
    _
  %s9 = ssub.s32 1, %s7
  %s10 = scalar_select 0, %s9, %s7
  %11 = sst [smem:[#allocation3]] %s0
  $region1: #{tpu_custom_call.1} parent=0
    #allocation4 [shape = 'u8[8192]{0}', space=vmem, size = 0x2000, scoped, tag = 'input window, operand 1, single buffered']
    #allocation5 [shape = 's32[1]{0}', space=sflag, size = 0x4, scoped, tag = 'scoped memory for tpu_custom_call.1']
    #allocation6 [shape = 's32[1]{0}', space=sflag, size = 0x4, scoped, tag = 'scoped memory for tpu_custom_call.1']
    #allocation7 [shape = 'u8[16384]{0}', space=vmem, size = 0x4000, scoped, tag = 'input window, operand 2, single buffered']
    #allocation8 [shape = 's32[1]{0}', space=sflag, size = 0x4, scoped, tag = 'scoped memory for tpu_custom_call.1']
    #allocation9 [shape = 'u8[8192]{0}', space=vmem, size = 0x2000, scoped, tag = 'output window, operand 0, single buffered']
    #allocation10 [shape = 'u8[1024]{0}', space=vmem, size = 0x400, scoped, tag = 'output window, operand 1, single buffered']
    #allocation11 [shape = 's32[1]{0}', space=sflag, size = 0x4, scoped, tag = 'scoped memory for tpu_custom_call.1']
    %12 = vsyncpa [#allocation5], 0
    %13 = vsyncpa [#allocation8], 0
    %14 = vsyncpa [#allocation6], 0
    %15 = vsyncpa [#allocation11], 0
    // Predicated region
    $region2: #{tpu_custom_call.1} parent=1 // pred_check
      _
    $region3: #{tpu_custom_call.1} parent=1 // pred_check_branch
      %17 = sbr.rel (0) target = $region5
    $region4: #{tpu_custom_call.1} parent=1 // pred_region
      %s19 = ssub.s32 256, 256
      %20 = vsyncadd [#allocation5], %s19
      %s21 = sshll.u32 [#allocation4], 4
      %s22 = int_to_ptr.vmem [resolvable:$true] %s21
      %27 = dma.hbm_to_vmem [thread:$0]  %s1, 256, %s22, [#allocation5], 128, 128, 8
    $region5: #{tpu_custom_call.1} parent=1 // pred_fallthru
      _
    // Predicated region
    $region6: #{tpu_custom_call.1} parent=1 // pred_check
      _
    $region7: #{tpu_custom_call.1} parent=1 // pred_check_branch
      %29 = sbr.rel (0) target = $region9
    $region8: #{tpu_custom_call.1} parent=1 // pred_region
      %s31 = ssub.s32 512, 512
      %32 = vsyncadd [#allocation8], %s31
      %s33 = sshll.u32 [#allocation7], 4
      %s34 = int_to_ptr.vmem [resolvable:$true] %s33
      %39 = dma.hbm_to_vmem [thread:$0]  %s2, 512, %s34, [#allocation8], 128, 128, 8
    $region9: #{tpu_custom_call.1} parent=1 // pred_fallthru
      _
    // Predicated region
    $region10: #{tpu_custom_call.1} parent=1 // pred_check
      _
    $region11: #{tpu_custom_call.1} parent=1 // pred_check_branch
      %41 = sbr.rel (0) target = $region13
    $region12: #{tpu_custom_call.1} parent=1 // pred_region
      _
    $region13: #{tpu_custom_call.1} parent=1 // pred_fallthru
      _
    // Predicated region
    $region14: #{tpu_custom_call.1} parent=1 // pred_check
      _
    $region15: #{tpu_custom_call.1} parent=1 // pred_check_branch
      %43 = sbr.rel (0) target = $region17
    $region16: #{tpu_custom_call.1} parent=1 // pred_region
      %44 = dma.done [#allocation5], 256
    $region17: #{tpu_custom_call.1} parent=1 // pred_fallthru
      _
    // Predicated region
    $region18: #{tpu_custom_call.1} parent=1 // pred_check
      _
    $region19: #{tpu_custom_call.1} parent=1 // pred_check_branch
      %46 = sbr.rel (0) target = $region21
    $region20: #{tpu_custom_call.1} parent=1 // pred_region
      %47 = dma.done [#allocation8], 512
    $region21: #{tpu_custom_call.1} parent=1 // pred_fallthru
      _
    %v48 = vld [vmem:[#allocation4] sm:$0xff]
    %v49 = vld [vmem:[#allocation4 + $0x8] sm:$0xff]
    %v50 = vld [vmem:[#allocation7] sm:$0xff]
    %v51 = vld [vmem:[#allocation7 + $0x8] sm:$0xff]
    %v52 = vld [vmem:[#allocation7 + $0x10] sm:$0xff]
    %v53 = vld [vmem:[#allocation7 + $0x18] sm:$0xff]
    %v54 = vld [vmem:[%s3] sm:$0x1]
    %v55 = vld [vmem:[%s3 + $0x1] sm:$0x1]
    %s56 = sld [smem:[#allocation3]]
    %s57 = smul.f32 %s56, %s56
    %s58 = smax.f32 %s57, 0.0001
    %v59 = vstv %s58
    %v60 = vrcp.pop %v59
    %s61 = vtos %v60
    %s62 = smul.f32 %s61, 2.0
    %vm63 = vcmask 261120
    %v65 = vsel %vm63, %v48, 0
    %v68 = vsel %vm63, %v50, 0
    %v71 = vsel %vm63, %v51, 0
    %73 = vmatprep.subr.mxu0 0.0
    %74 = vmatpush1.xpose.msra.mxu0 0.0
    %75 = vmatprep.subr.mxu0 0.0
    %76 = vmatpush1.xpose.msra.mxu0 0.0
    %77 = vmatprep.subr.mxu0 0.0
    %78 = vmatpush1.xpose.msra.mxu0 0.0
    %79 = vmatprep.subr.mxu0 0.0
    %80 = vmatpush1.xpose.msra.mxu0 0.0
    %81 = vmatprep.subr.mxu0 0.0
    %82 = vmatpush1.xpose.msra.mxu0 0.0
    %83 = vmatprep.subr.mxu0 0.0
    %84 = vmatpush1.xpose.msra.mxu0 0.0
    %85 = vmatprep.subr.mxu0 0.0
    %86 = vmatpush1.xpose.msra.mxu0 0.0
    %87 = vmatprep.subr.mxu0 0.0
    %88 = vmatpush1.xpose.msra.mxu0 0.0
    %89 = vmatprep.subr.mxu0 0.0
    %90 = vmatpush1.xpose.msra.mxu0 0.0
    %91 = vmatprep.subr.mxu0 0.0
    %92 = vmatpush1.xpose.msra.mxu0 0.0
    %93 = vmatprep.subr.mxu0 0.0
    %94 = vmatpush1.xpose.msra.mxu0 0.0
    %95 = vmatprep.subr.mxu0 0.0
    %96 = vmatpush1.xpose.msra.mxu0 0.0
    %97 = vmatprep.subr.mxu0 0.0
    %98 = vmatpush1.xpose.msra.mxu0 0.0
    %99 = vmatprep.subr.mxu0 0.0
    %100 = vmatpush1.xpose.msra.mxu0 0.0
    %101 = vmatprep.subr.mxu0 0.0
    %102 = vmatpush1.xpose.msra.mxu0 %v71
    %103 = vmatprep.subr.mxu0 0.0
    %104 = vmatpush1.xpose.msra.mxu0 %v68
    %105 = vmatprep.subr.mxu0 0.0
    %106 = vmatpush2.xpose.msra.mxu0 0.0
    %107 = vmatprep.subr.mxu0 0.0
    %108 = vmatpush2.xpose.msra.mxu0 0.0
    %109 = vmatprep.subr.mxu0 0.0
    %110 = vmatpush2.xpose.msra.mxu0 0.0
    %111 = vmatprep.subr.mxu0 0.0
    %112 = vmatpush2.xpose.msra.mxu0 0.0
    %113 = vmatprep.subr.mxu0 0.0
    %114 = vmatpush2.xpose.msra.mxu0 0.0
    %115 = vmatprep.subr.mxu0 0.0
    %116 = vmatpush2.xpose.msra.mxu0 0.0
    %117 = vmatprep.subr.mxu0 0.0
    %118 = vmatpush2.xpose.msra.mxu0 0.0
    %119 = vmatprep.subr.mxu0 0.0
    %120 = vmatpush2.xpose.msra.mxu0 0.0
    %121 = vmatprep.subr.mxu0 0.0
    %122 = vmatpush2.xpose.msra.mxu0 0.0
    %123 = vmatprep.subr.mxu0 0.0
    %124 = vmatpush2.xpose.msra.mxu0 0.0
    %125 = vmatprep.subr.mxu0 0.0
    %126 = vmatpush2.xpose.msra.mxu0 0.0
    %127 = vmatprep.subr.mxu0 0.0
    %128 = vmatpush2.xpose.msra.mxu0 0.0
    %129 = vmatprep.subr.mxu0 0.0
    %130 = vmatpush2.xpose.msra.mxu0 0.0
    %131 = vmatprep.subr.mxu0 0.0
    %132 = vmatpush2.xpose.msra.mxu0 0.0
    %133 = vmatprep.subr.mxu0 0.0
    %134 = vmatpush2.xpose.msra.mxu0 0.0
    %135 = vmatprep.subr.mxu0 0.0
    %136 = vmatpush2.xpose.msra.mxu0 0.0
    %137 = vmatprep.mubr.f32.mxu0 0.0
    %138 = vmatmul.mubr.f32.gmra.mxu0 %v65
    %v139 = vpop.f32.mrf.mxu0
    %v140 = vadd.f32 0.0, %v139
    %v141 = vpop.f32.mrf.mxu0
    %142 = vdwg.mxu0
    %v144 = vsel %vm63, %v49, 0
    %v147 = vsel %vm63, %v52, 0
    %v150 = vsel %vm63, %v53, 0
    %152 = vmatprep.subr.mxu0 0.0
    %153 = vmatpush1.xpose.msra.mxu0 0.0
    %154 = vmatprep.subr.mxu0 0.0
    %155 = vmatpush1.xpose.msra.mxu0 0.0
    %156 = vmatprep.subr.mxu0 0.0
    %157 = vmatpush1.xpose.msra.mxu0 0.0
    %158 = vmatprep.subr.mxu0 0.0
    %159 = vmatpush1.xpose.msra.mxu0 0.0
    %160 = vmatprep.subr.mxu0 0.0
    %161 = vmatpush1.xpose.msra.mxu0 0.0
    %162 = vmatprep.subr.mxu0 0.0
    %163 = vmatpush1.xpose.msra.mxu0 0.0
    %164 = vmatprep.subr.mxu0 0.0
    %165 = vmatpush1.xpose.msra.mxu0 0.0
    %166 = vmatprep.subr.mxu0 0.0
    %167 = vmatpush1.xpose.msra.mxu0 0.0
    %168 = vmatprep.subr.mxu0 0.0
    %169 = vmatpush1.xpose.msra.mxu0 0.0
    %170 = vmatprep.subr.mxu0 0.0
    %171 = vmatpush1.xpose.msra.mxu0 0.0
    %172 = vmatprep.subr.mxu0 0.0
    %173 = vmatpush1.xpose.msra.mxu0 0.0
    %174 = vmatprep.subr.mxu0 0.0
    %175 = vmatpush1.xpose.msra.mxu0 0.0
    %176 = vmatprep.subr.mxu0 0.0
    %177 = vmatpush1.xpose.msra.mxu0 0.0
    %178 = vmatprep.subr.mxu0 0.0
    %179 = vmatpush1.xpose.msra.mxu0 0.0
    %180 = vmatprep.subr.mxu0 0.0
    %181 = vmatpush1.xpose.msra.mxu0 %v150
    %182 = vmatprep.subr.mxu0 0.0
    %183 = vmatpush1.xpose.msra.mxu0 %v147
    %184 = vmatprep.subr.mxu0 0.0
    %185 = vmatpush2.xpose.msra.mxu0 0.0
    %186 = vmatprep.subr.mxu0 0.0
    %187 = vmatpush2.xpose.msra.mxu0 0.0
    %188 = vmatprep.subr.mxu0 0.0
    %189 = vmatpush2.xpose.msra.mxu0 0.0
    %190 = vmatprep.subr.mxu0 0.0
    %191 = vmatpush2.xpose.msra.mxu0 0.0
    %192 = vmatprep.subr.mxu0 0.0
    %193 = vmatpush2.xpose.msra.mxu0 0.0
    %194 = vmatprep.subr.mxu0 0.0
    %195 = vmatpush2.xpose.msra.mxu0 0.0
    %196 = vmatprep.subr.mxu0 0.0
    %197 = vmatpush2.xpose.msra.mxu0 0.0
    %198 = vmatprep.subr.mxu0 0.0
    %199 = vmatpush2.xpose.msra.mxu0 0.0
    %200 = vmatprep.subr.mxu0 0.0
    %201 = vmatpush2.xpose.msra.mxu0 0.0
    %202 = vmatprep.subr.mxu0 0.0
    %203 = vmatpush2.xpose.msra.mxu0 0.0
    %204 = vmatprep.subr.mxu0 0.0
    %205 = vmatpush2.xpose.msra.mxu0 0.0
    %206 = vmatprep.subr.mxu0 0.0
    %207 = vmatpush2.xpose.msra.mxu0 0.0
    %208 = vmatprep.subr.mxu0 0.0
    %209 = vmatpush2.xpose.msra.mxu0 0.0
    %210 = vmatprep.subr.mxu0 0.0
    %211 = vmatpush2.xpose.msra.mxu0 0.0
    %212 = vmatprep.subr.mxu0 0.0
    %213 = vmatpush2.xpose.msra.mxu0 0.0
    %214 = vmatprep.subr.mxu0 0.0
    %215 = vmatpush2.xpose.msra.mxu0 0.0
    %216 = vmatprep.mubr.f32.mxu0 0.0
    %217 = vmatmul.mubr.f32.gmra.mxu0 %v144
    %v218 = vpop.f32.mrf.mxu0
    %v219 = vadd.f32 0.0, %v218
    %v220 = vpop.f32.mrf.mxu0
    %221 = vdwg.mxu0
    %v224 = vlaneseq
    %v225 = vshrl.u32 %v224, 7
    %v226 = vsub.s32 0, %v225
    %v227 = vrot.slane %v54, %v226
    %v228 = vlaneseq
    %v229 = vshrl.u32 %v228, 7
    %v230 = vsub.s32 0, %v229
    %v231 = vrot.slane %v55, %v230
    %v234 = vsub.f32 %v140, %v227
    %v235 = vsub.f32 %v219, %v231
    %v236 = vstv %s62
    %v237 = vmul.f32 %v234, %v236
    %v238 = vmul.f32 %v235, %v236
    %vm239 = vcmask 130048
    %v240 = vsel %vm239, %v237, -inf
    %241 = vmax.xlane.f32.xlu0 %v240
    %v242 = vpop.xlane.xlu0 %241
    %v243 = vsel %vm239, %v238, -inf
    %244 = vmax.xlane.f32.xlu0 %v243
    %v245 = vpop.xlane.xlu0 %244
    %v246 = vlaneseq
    %v247 = vand.u32 %v246, 127
    %vm248 = vcmp.eq.f32.partialorder %v237, %v242
    %vm249 = vcmp.eq.f32.partialorder %v238, %v245
    %v250 = vsel %vm248, %v247, 2147483647
    %v251 = vsel %vm249, %v247, 2147483647
    %v252 = vsel %vm239, %v250, 2147483647
    %v253 = vand.u32 %v252, 65535
    %v254 = vshra.s32 %v252, 16
    %v255 = vcvt.s32.f32 %v253
    %v256 = vcvt.s32.f32 %v254
    %257 = vmin.xlane.f32.xlu0 %v256
    %v258 = vpop.xlane.xlu0 %257
    %vm259 = vcmp.eq.f32.partialorder %v256, %v258
    %v260 = vsel %vm259, %v255, inf
    %261 = vmin.xlane.f32.xlu0 %v260
    %v262 = vpop.xlane.xlu0 %261
    %v263 = vcvt.f32.s32 %v262
    %v264 = vcvt.f32.s32 %v258
    %v265 = vshll.u32 %v264, 16
    %v266 = vadd.s32 %v265, %v263
    %v267 = vsel %vm239, %v251, 2147483647
    %v268 = vand.u32 %v267, 65535
    %v269 = vshra.s32 %v267, 16
    %v270 = vcvt.s32.f32 %v268
    %v271 = vcvt.s32.f32 %v269
    %272 = vmin.xlane.f32.xlu0 %v271
    %v273 = vpop.xlane.xlu0 %272
    %vm274 = vcmp.eq.f32.partialorder %v271, %v273
    %v275 = vsel %vm274, %v270, inf
    %276 = vmin.xlane.f32.xlu0 %v275
    %v277 = vpop.xlane.xlu0 %276
    %v278 = vcvt.f32.s32 %v277
    %v279 = vcvt.f32.s32 %v273
    %v280 = vshll.u32 %v279, 16
    %v281 = vadd.s32 %v280, %v278
    %v282 = vsub.f32 %v237, %v242
    %v283 = vsub.f32 %v238, %v245
    %v284 = vmul.f32 %v282, 1.442695
    %v285 = vpow.pop %v284
    %v286 = vmul.f32 %v283, 1.442695
    %v287 = vpow.pop %v286
    %v288 = vsel %vm239, %v285, 0.0
    %289 = vadd.xlane.f32.xlu0 %v288
    %v290 = vpop.xlane.xlu0 %289
    %v291 = vsel %vm239, %v287, 0.0
    %292 = vadd.xlane.f32.xlu0 %v291
    %v293 = vpop.xlane.xlu0 %292
    %v294 = vrcp.pop %v290
    %v295 = vrcp.pop %v293
    %v296 = vmul.f32 %v285, %v294
    %v297 = vmul.f32 %v287, %v295
    %298 = vst.msk [vmem:[#allocation9] sm:$0xff] %vm239, %v296
    %299 = vst.msk [vmem:[#allocation9 + $0x8] sm:$0xff] %vm239, %v297
    %300 = vxpose.xlu0.b32.start [1/16] %v266, 128
    %301 = vxpose.xlu0.b32.cont [2/16] 0, 128
    %302 = vxpose.xlu0.b32.cont [3/16] 0, 128
    %303 = vxpose.xlu0.b32.cont [4/16] 0, 128
    %304 = vxpose.xlu0.b32.cont [5/16] 0, 128
    %305 = vxpose.xlu0.b32.cont [6/16] 0, 128
    %306 = vxpose.xlu0.b32.cont [7/16] 0, 128
    %307 = vxpose.xlu0.b32.cont [8/16] 0, 128
    %308 = vxpose.xlu0.b32.cont [9/16] 0, 128
    %309 = vxpose.xlu0.b32.cont [10/16] 0, 128
    %310 = vxpose.xlu0.b32.cont [11/16] 0, 128
    %311 = vxpose.xlu0.b32.cont [12/16] 0, 128
    %312 = vxpose.xlu0.b32.cont [13/16] 0, 128
    %313 = vxpose.xlu0.b32.cont [14/16] 0, 128
    %314 = vxpose.xlu0.b32.cont [15/16] 0, 128
    %315 = vxpose.xlu0.b32.end [16/16] 0, 128
    %v316 = vpop.trf.xlu0
    %v317 = vpop.trf.xlu0
    %v318 = vpop.trf.xlu0
    %v319 = vpop.trf.xlu0
    %v320 = vpop.trf.xlu0
    %v321 = vpop.trf.xlu0
    %v322 = vpop.trf.xlu0
    %v323 = vpop.trf.xlu0
    %v324 = vpop.trf.xlu0
    %v325 = vpop.trf.xlu0
    %v326 = vpop.trf.xlu0
    %v327 = vpop.trf.xlu0
    %v328 = vpop.trf.xlu0
    %v329 = vpop.trf.xlu0
    %v330 = vpop.trf.xlu0
    %v331 = vpop.trf.xlu0
    %332 = vxpose.xlu0.b32.start [1/16] %v281, 128
    %333 = vxpose.xlu0.b32.cont [2/16] 0, 128
    %334 = vxpose.xlu0.b32.cont [3/16] 0, 128
    %335 = vxpose.xlu0.b32.cont [4/16] 0, 128
    %336 = vxpose.xlu0.b32.cont [5/16] 0, 128
    %337 = vxpose.xlu0.b32.cont [6/16] 0, 128
    %338 = vxpose.xlu0.b32.cont [7/16] 0, 128
    %339 = vxpose.xlu0.b32.cont [8/16] 0, 128
    %340 = vxpose.xlu0.b32.cont [9/16] 0, 128
    %341 = vxpose.xlu0.b32.cont [10/16] 0, 128
    %342 = vxpose.xlu0.b32.cont [11/16] 0, 128
    %343 = vxpose.xlu0.b32.cont [12/16] 0, 128
    %344 = vxpose.xlu0.b32.cont [13/16] 0, 128
    %345 = vxpose.xlu0.b32.cont [14/16] 0, 128
    %346 = vxpose.xlu0.b32.cont [15/16] 0, 128
    %347 = vxpose.xlu0.b32.end [16/16] 0, 128
    %v348 = vpop.trf.xlu0
    %v349 = vpop.trf.xlu0
    %v350 = vpop.trf.xlu0
    %v351 = vpop.trf.xlu0
    %v352 = vpop.trf.xlu0
    %v353 = vpop.trf.xlu0
    %v354 = vpop.trf.xlu0
    %v355 = vpop.trf.xlu0
    %v356 = vpop.trf.xlu0
    %v357 = vpop.trf.xlu0
    %v358 = vpop.trf.xlu0
    %v359 = vpop.trf.xlu0
    %v360 = vpop.trf.xlu0
    %v361 = vpop.trf.xlu0
    %v362 = vpop.trf.xlu0
    %v363 = vpop.trf.xlu0
    %vm364 = vcmask 57344
    %365 = vst.msk [vmem:[#allocation10] sm:$0x1] %vm364, %v316
    %366 = vst.msk [vmem:[#allocation10 + $0x1] sm:$0x1] %vm364, %v348
    // Predicated region
    $region22: #{tpu_custom_call.1} parent=1 // pred_check
      _
    $region23: #{tpu_custom_call.1} parent=1 // pred_check_branch
      %368 = sbr.rel (0) target = $region25
    $region24: #{tpu_custom_call.1} parent=1 // pred_region
      %s370 = ssub.s32 256, 256
      %371 = vsyncadd [#allocation6], %s370
      %s372 = sshll.u32 [#allocation9], 4
      %s373 = int_to_ptr.vmem [resolvable:$true] %s372
      %378 = dma.vmem_to_hbm [thread:$0]  %s373, 256, %s4, [#allocation6], 128, 128, 8
    $region25: #{tpu_custom_call.1} parent=1 // pred_fallthru
      _
    // Predicated region
    $region26: #{tpu_custom_call.1} parent=1 // pred_check
      _
    $region27: #{tpu_custom_call.1} parent=1 // pred_check_branch
      %380 = sbr.rel (0) target = $region29
    $region28: #{tpu_custom_call.1} parent=1 // pred_region
      %s382 = ssub.s32 32, 32
      %383 = vsyncadd [#allocation11], %s382
      %s384 = sshll.u32 [#allocation10], 4
      %s385 = int_to_ptr.vmem [resolvable:$true] %s384
      %390 = dma.vmem_to_hbm [thread:$0]  %s385, 32, %s5, [#allocation11], 16, 16, 1
    $region29: #{tpu_custom_call.1} parent=1 // pred_fallthru
      _
    // Predicated region
    $region30: #{tpu_custom_call.1} parent=1 // pred_check
      _
    $region31: #{tpu_custom_call.1} parent=1 // pred_check_branch
      %392 = sbr.rel (0) target = $region33
    $region32: #{tpu_custom_call.1} parent=1 // pred_region
      %393 = dma.done [#allocation6], 256
    $region33: #{tpu_custom_call.1} parent=1 // pred_fallthru
      _
    // Predicated region
    $region34: #{tpu_custom_call.1} parent=1 // pred_check
      _
    $region35: #{tpu_custom_call.1} parent=1 // pred_check_branch
      %395 = sbr.rel (0) target = $region37
    $region36: #{tpu_custom_call.1} parent=1 // pred_region
      %396 = dma.done [#allocation11], 32
    $region37: #{tpu_custom_call.1} parent=1 // pred_fallthru
      _
    %397 = vsyncpa [#allocation5], 1
    %398 = vsyncpa [#allocation8], 1
    %399 = vsyncpa [#allocation6], 1
    %400 = vsyncpa [#allocation11], 1

</llo_original>
